<compile_context>
chip_gen: v6e
topology: v6e:2x2x1
jax: 0.10.0
libtpu: 0.0.40
codegen_flags: <defaults>
</compile_context>

<pallas_src>
import functools

import jax
import jax.numpy as jnp
import numpy as np
from jax.experimental import pallas as pl
from jax.experimental.pallas import tpu as pltpu

_LANE = 128
_SUBLANE_BF16 = 16


def _round_up(x, m):
    return ((x + m - 1) // m) * m


# ------------------------------------------------------------------ kernels ---

def _conv_stats_kernel(w_ref, p_ref, conv_ref, sum_ref, ssq_ref):
    """Phase A: (Cout,Kp)@(Kp,tm) matmul, bf16 conv writeback, f32 batch stats."""
    j = pl.program_id(0)

    @pl.when(j == 0)
    def _init():
        sum_ref[...] = jnp.zeros_like(sum_ref)
        ssq_ref[...] = jnp.zeros_like(ssq_ref)

    acc = jnp.dot(w_ref[...], p_ref[...],
                  preferred_element_type=jnp.float32)        # (Cout, tm) f32
    conv_ref[...] = acc.astype(conv_ref.dtype)               # bf16 HBM intermediate
    # Zero-padded K/M columns contribute exactly 0 to both reductions.
    sum_ref[...] += jnp.sum(acc, axis=1, keepdims=True)
    ssq_ref[...] += jnp.sum(acc * acc, axis=1, keepdims=True)


def _bn_lrelu_kernel(conv_ref, scale_ref, shift_ref, o_ref, *, negative_slope):
    """Phase B: y = conv*scale + shift, LeakyReLU(0.1).  Lane-dense (Cout, tm)."""
    y = conv_ref[...].astype(jnp.float32) * scale_ref[...] + shift_ref[...]
    o_ref[...] = jnp.where(y >= 0, y, negative_slope * y)


# ------------------------------------------------------------------ wrapper ---

def _im2col_T_bf16(x_ncdhw, k, stride, padding):
    """Glue: transposed patch matrix (K, M) built directly in bf16.
    K ordering is (kd, kh, kw, Cin), M ordering is (N, Do, Ho, Wo)."""
    n, cin, d, h, w = x_ncdhw.shape
    do = (d + 2 * padding - k) // stride + 1
    ho = (h + 2 * padding - k) // stride + 1
    wo = (w + 2 * padding - k) // stride + 1
    xp = jnp.pad(x_ncdhw.astype(jnp.bfloat16),
                 ((0, 0), (0, 0),
                  (padding, padding), (padding, padding), (padding, padding)))
    xp = jnp.transpose(xp, (1, 0, 2, 3, 4))          # (Cin, N, Dp, Hp, Wp)
    rows = []
    for kd in range(k):
        for kh in range(k):
            for kw in range(k):
                rows.append(xp[:, :,
                               kd: kd + stride * do: stride,
                               kh: kh + stride * ho: stride,
                               kw: kw + stride * wo: stride])  # (Cin, N, Do, Ho, Wo)
    pt = jnp.stack(rows, axis=0)                     # (k^3, Cin, N, Do, Ho, Wo)
    return pt.reshape(k ** 3 * cin, n * do * ho * wo), (n, do, ho, wo)


@functools.partial(jax.jit, static_argnames=("kernel_size", "stride", "padding",
                                             "eps", "tm"))
def conv_layer_bn_forward(x, weight, gamma, beta, *, kernel_size, stride=1,
                          padding=0, eps=1e-5, tm=1024):
    """Forward of ConvLayer_BN.  x: (N, Cin, D, H, W); weight: (Cout, Cin, k, k, k)."""
    cout = weight.shape[0]
    k = kernel_size

    # ---- glue: bf16 transposed im2col; M = N*Do*Ho*Wo goes on the lane axis ----
    pt, (n, do, ho, wo) = _im2col_T_bf16(x, k, stride, padding)
    kdim, m = pt.shape

    kp = _round_up(kdim, _SUBLANE_BF16)      # 108 -> 112 (bf16 sublane pack, not 128)
    tm = max(_LANE, min(tm, _round_up(m, _LANE)))
    mp = _round_up(m, tm)
    nj = mp // tm

    pt = jnp.pad(pt, ((0, kp - kdim), (0, mp - m)))                     # bf16
    w_t = jnp.transpose(weight, (0, 2, 3, 4, 1)).reshape(cout, kdim)
    w_t = jnp.pad(w_t, ((0, 0), (0, kp - kdim))).astype(jnp.bfloat16)   # (Cout, Kp)

    # ---- pass A: conv matmul + per-channel sum / sumsq (stats accumulator ->
    #      grid must stay sequential/"arbitrary") -------------------------------
    conv_bf16, csum, cssq = pl.pallas_call(
        _conv_stats_kernel,
        out_shape=(jax.ShapeDtypeStruct((cout, mp), jnp.bfloat16),
                   jax.ShapeDtypeStruct((cout, 1), jnp.float32),
                   jax.ShapeDtypeStruct((cout, 1), jnp.float32)),
        grid_spec=pltpu.PrefetchScalarGridSpec(
            num_scalar_prefetch=0,
            grid=(nj,),
            in_specs=[
                pl.BlockSpec((cout, kp), lambda j: (0, 0)),   # weights (resident)
                pl.BlockSpec((kp, tm), lambda j: (0, j)),     # patch tiles
            ],
            out_specs=[
                pl.BlockSpec((cout, tm), lambda j: (0, j)),   # bf16 conv result
                pl.BlockSpec((cout, 1), lambda j: (0, 0)),    # resident sum acc
                pl.BlockSpec((cout, 1), lambda j: (0, 0)),    # resident sumsq acc
            ],
        ),
        compiler_params=pltpu.CompilerParams(
            dimension_semantics=("arbitrary",)),
    )(w_t, pt)

    # ---- glue: fold training-mode BatchNorm3d into per-channel scale/shift ----
    inv_m = 1.0 / m
    mean = csum * inv_m
    var = jnp.maximum(cssq * inv_m - mean * mean, 0.0)   # biased var; clamp vs cancellation
    scale = gamma.reshape(cout, 1).astype(jnp.float32) * jax.lax.rsqrt(var + eps)
    shift = beta.reshape(cout, 1).astype(jnp.float32) - mean * scale

    # ---- pass B: normalize + LeakyReLU (fully parallel over M tiles) ----------
    out = pl.pallas_call(
        functools.partial(_bn_lrelu_kernel, negative_slope=0.1),
        out_shape=jax.ShapeDtypeStruct((cout, mp), jnp.float32),
        grid_spec=pltpu.PrefetchScalarGridSpec(
            num_scalar_prefetch=0,
            grid=(nj,),
            in_specs=[
                pl.BlockSpec((cout, tm), lambda j: (0, j)),   # bf16 conv tiles
                pl.BlockSpec((cout, 1), lambda j: (0, 0)),    # folded BN scale
                pl.BlockSpec((cout, 1), lambda j: (0, 0)),    # folded BN shift
            ],
            out_specs=pl.BlockSpec((cout, tm), lambda j: (0, j)),
        ),
        compiler_params=pltpu.CompilerParams(
            dimension_semantics=("parallel",)),
    )(conv_bf16, scale, shift)

    # ---- glue: (Cout, M) -> NCDHW -------------------------------------------
    out = out[:, :m].reshape(cout, n, do, ho, wo)
    return jnp.transpose(out, (1, 0, 2, 3, 4))


# --------------------------------------------------------------------- main ---

if __name__ == "__main__":
    # Small shapes consistent with the module: Conv3d(4 -> 8, k=3, stride=1, pad=1).
    N, C_IN, C_OUT, D, H, W = 2, 4, 8, 8, 8, 8
    K, STRIDE, PAD = 3, 1, 1

    key = jax.random.PRNGKey(0)
    kx, kw_, kg, kb = jax.random.split(key, 4)
    x = jax.random.normal(kx, (N, C_IN, D, H, W), dtype=jnp.float32)
    weight = 0.1 * jax.random.normal(kw_, (C_OUT, C_IN, K, K, K), dtype=jnp.float32)
    gamma = 1.0 + 0.1 * jax.random.normal(kg, (C_OUT,), dtype=jnp.float32)
    beta = 0.1 * jax.random.normal(kb, (C_OUT,), dtype=jnp.float32)

    out = conv_layer_bn_forward(x, weight, gamma, beta,
                                kernel_size=K, stride=STRIDE, padding=PAD)
    out = jax.block_until_ready(out)

    # Independent f32 reference: Conv3d -> training-mode BatchNorm3d -> LeakyReLU(0.1)
    conv = jax.lax.conv_general_dilated(
        x, weight, window_strides=(STRIDE,) * 3, padding=[(PAD, PAD)] * 3,
        dimension_numbers=("NCDHW", "OIDHW", "NCDHW"),
        precision=jax.lax.Precision.HIGHEST)
    mu = conv.mean(axis=(0, 2, 3, 4), keepdims=True)
    var = conv.var(axis=(0, 2, 3, 4), keepdims=True)          # biased, BN training mode
    yn = (conv - mu) * jax.lax.rsqrt(var + 1e-5)
    yn = yn * gamma.reshape(1, -1, 1, 1, 1) + beta.reshape(1, -1, 1, 1, 1)
    ref = jnp.where(yn >= 0, yn, 0.1 * yn)

    # Tolerance reflects the bf16 matmul operands / bf16 conv intermediate (f32 stats).
    np.testing.assert_allclose(np.asarray(out), np.asarray(ref), rtol=5e-2, atol=5e-2)
    print("KERNEL_OK")
</pallas_src>

<mosaic_0001>
module attributes {stable_mosaic.version = 11 : i64} {
  func.func @_conv_stats_kernel(%arg0: i32, %arg1: memref<8x112xbf16, #tpu.memory_space<vmem>>, %arg2: memref<112x1024xbf16, #tpu.memory_space<vmem>>, %arg3: memref<8x1024xbf16, #tpu.memory_space<vmem>>, %arg4: memref<8x1xf32, #tpu.memory_space<vmem>>, %arg5: memref<8x1xf32, #tpu.memory_space<vmem>>) attributes {dimension_semantics = [#tpu.dimension_semantics<arbitrary>], iteration_bounds = array<i64: 1>, scalar_prefetch = 0 : i64, scratch_operands = 0 : i64, tpu.core_type = #tpu.core_type<tc>, window_params = [{pipeline_mode = #tpu.pipeline_mode<synchronous>, transform_indices = @transform_0, window_bounds = array<i64: 8, 112>}, {transform_indices = @transform_1, window_bounds = array<i64: 112, 1024>}, {transform_indices = @transform_2, window_bounds = array<i64: 8, 1024>}, {pipeline_mode = #tpu.pipeline_mode<synchronous>, transform_indices = @transform_3, window_bounds = array<i64: 8, 1>}, {pipeline_mode = #tpu.pipeline_mode<synchronous>, transform_indices = @transform_4, window_bounds = array<i64: 8, 1>}]} {
    %c0_i32 = arith.constant 0 : i32
    %0 = arith.cmpi eq, %arg0, %c0_i32 : i32
    %1 = arith.extui %0 : i1 to i32
    %c0_i32_0 = arith.constant 0 : i32
    %2 = arith.cmpi ne, %1, %c0_i32_0 : i32
    scf.if %2 {
      %cst_16 = arith.constant 0.000000e+00 : f32
      %19 = vector.broadcast %cst_16 : f32 to vector<8x1xf32>
      %c0_17 = arith.constant 0 : index
      %c0_18 = arith.constant 0 : index
      %20 = vector.load %arg4[%c0_17, %c0_18] : memref<8x1xf32, #tpu.memory_space<vmem>>, vector<8x1xf32>
      tpu.vector_store %arg4[%c0_17, %c0_18], %19 {strides = array<i32>} : memref<8x1xf32, #tpu.memory_space<vmem>>, vector<8x1xf32>,
      %cst_19 = arith.constant 0.000000e+00 : f32
      %21 = vector.broadcast %cst_19 : f32 to vector<8x1xf32>
      %c0_20 = arith.constant 0 : index
      %c0_21 = arith.constant 0 : index
      %22 = vector.load %arg5[%c0_20, %c0_21] : memref<8x1xf32, #tpu.memory_space<vmem>>, vector<8x1xf32>
      tpu.vector_store %arg5[%c0_20, %c0_21], %21 {strides = array<i32>} : memref<8x1xf32, #tpu.memory_space<vmem>>, vector<8x1xf32>,
    } else {
    }
    %c0 = arith.constant 0 : index
    %c0_1 = arith.constant 0 : index
    %3 = vector.load %arg1[%c0, %c0_1] : memref<8x112xbf16, #tpu.memory_space<vmem>>, vector<8x112xbf16>
    %c0_2 = arith.constant 0 : index
    %c0_3 = arith.constant 0 : index
    %4 = vector.load %arg2[%c0_2, %c0_3] : memref<112x1024xbf16, #tpu.memory_space<vmem>>, vector<112x1024xbf16>
    %cst = arith.constant dense<0.000000e+00> : vector<8x1024xf32>
    %5 = tpu.matmul %3, %4, %cst {dimension_numbers = #tpu.dot_dimension_numbers<[1], [0], [0], [1], [0, 0, 1, 1], [], []>} : vector<8x112xbf16>, vector<112x1024xbf16>, vector<8x1024xf32> -> vector<8x1024xf32>
    %6 = arith.truncf %5 : vector<8x1024xf32> to vector<8x1024xbf16>
    %c0_4 = arith.constant 0 : index
    %c0_5 = arith.constant 0 : index
    %7 = vector.load %arg3[%c0_4, %c0_5] : memref<8x1024xbf16, #tpu.memory_space<vmem>>, vector<8x1024xbf16>
    tpu.vector_store %arg3[%c0_4, %c0_5], %6 {strides = array<i32>} : memref<8x1024xbf16, #tpu.memory_space<vmem>>, vector<8x1024xbf16>,
    %c0_6 = arith.constant 0 : index
    %c0_7 = arith.constant 0 : index
    %8 = vector.load %arg4[%c0_6, %c0_7] : memref<8x1xf32, #tpu.memory_space<vmem>>, vector<8x1xf32>
    %cst_8 = arith.constant dense<0.000000e+00> : vector<8xf32>
    %9 = vector.multi_reduction <add>, %5, %cst_8 [1] : vector<8x1024xf32> to vector<8xf32>
    %10 = vector.shape_cast %9 : vector<8xf32> to vector<8x1xf32>
    %11 = arith.addf %8, %10 : vector<8x1xf32>
    %c0_9 = arith.constant 0 : index
    %c0_10 = arith.constant 0 : index
    %12 = vector.load %arg4[%c0_9, %c0_10] : memref<8x1xf32, #tpu.memory_space<vmem>>, vector<8x1xf32>
    tpu.vector_store %arg4[%c0_9, %c0_10], %11 {strides = array<i32>} : memref<8x1xf32, #tpu.memory_space<vmem>>, vector<8x1xf32>,
    %c0_11 = arith.constant 0 : index
    %c0_12 = arith.constant 0 : index
    %13 = vector.load %arg5[%c0_11, %c0_12] : memref<8x1xf32, #tpu.memory_space<vmem>>, vector<8x1xf32>
    %14 = arith.mulf %5, %5 : vector<8x1024xf32>
    %cst_13 = arith.constant dense<0.000000e+00> : vector<8xf32>
    %15 = vector.multi_reduction <add>, %14, %cst_13 [1] : vector<8x1024xf32> to vector<8xf32>
    %16 = vector.shape_cast %15 : vector<8xf32> to vector<8x1xf32>
    %17 = arith.addf %13, %16 : vector<8x1xf32>
    %c0_14 = arith.constant 0 : index
    %c0_15 = arith.constant 0 : index
    %18 = vector.load %arg5[%c0_14, %c0_15] : memref<8x1xf32, #tpu.memory_space<vmem>>, vector<8x1xf32>
    tpu.vector_store %arg5[%c0_14, %c0_15], %17 {strides = array<i32>} : memref<8x1xf32, #tpu.memory_space<vmem>>, vector<8x1xf32>,
    return
  }
  func.func @transform_0(%arg0: i32) -> (i32, i32) {
    %c0_i32 = arith.constant 0 : i32
    %c0_i32_0 = arith.constant 0 : i32
    %c0_i32_1 = arith.constant 0 : i32
    return %c0_i32, %c0_i32_0 : i32, i32
  }
  func.func @transform_1(%arg0: i32) -> (i32, i32) {
    %c0_i32 = arith.constant 0 : i32
    %c0_i32_0 = arith.constant 0 : i32
    return %c0_i32, %arg0 : i32, i32
  }
  func.func @transform_2(%arg0: i32) -> (i32, i32) {
    %c0_i32 = arith.constant 0 : i32
    %c0_i32_0 = arith.constant 0 : i32
    return %c0_i32, %arg0 : i32, i32
  }
  func.func @transform_3(%arg0: i32) -> (i32, i32) {
    %c0_i32 = arith.constant 0 : i32
    %c0_i32_0 = arith.constant 0 : i32
    %c0_i32_1 = arith.constant 0 : i32
    return %c0_i32, %c0_i32_0 : i32, i32
  }
  func.func @transform_4(%arg0: i32) -> (i32, i32) {
    %c0_i32 = arith.constant 0 : i32
    %c0_i32_0 = arith.constant 0 : i32
    %c0_i32_1 = arith.constant 0 : i32
    return %c0_i32, %c0_i32_0 : i32, i32
  }
}

module attributes {stable_mosaic.version = 11 : i64} {
  func.func @_bn_lrelu_kernel(%arg0: i32, %arg1: memref<8x1024xbf16, #tpu.memory_space<vmem>>, %arg2: memref<8x1xf32, #tpu.memory_space<vmem>>, %arg3: memref<8x1xf32, #tpu.memory_space<vmem>>, %arg4: memref<8x1024xf32, #tpu.memory_space<vmem>>) attributes {dimension_semantics = [#tpu.dimension_semantics<parallel>], iteration_bounds = array<i64: 1>, scalar_prefetch = 0 : i64, scratch_operands = 0 : i64, tpu.core_type = #tpu.core_type<tc>, window_params = [{transform_indices = @transform_0, window_bounds = array<i64: 8, 1024>}, {pipeline_mode = #tpu.pipeline_mode<synchronous>, transform_indices = @transform_1, window_bounds = array<i64: 8, 1>}, {pipeline_mode = #tpu.pipeline_mode<synchronous>, transform_indices = @transform_2, window_bounds = array<i64: 8, 1>}, {transform_indices = @transform_3, window_bounds = array<i64: 8, 1024>}]} {
    %c0 = arith.constant 0 : index
    %c0_0 = arith.constant 0 : index
    %0 = vector.load %arg1[%c0, %c0_0] : memref<8x1024xbf16, #tpu.memory_space<vmem>>, vector<8x1024xbf16>
    %1 = arith.extf %0 : vector<8x1024xbf16> to vector<8x1024xf32>
    %c0_1 = arith.constant 0 : index
    %c0_2 = arith.constant 0 : index
    %2 = vector.load %arg2[%c0_1, %c0_2] : memref<8x1xf32, #tpu.memory_space<vmem>>, vector<8x1xf32>
    %3 = vector.broadcast %2 : vector<8x1xf32> to vector<8x1024xf32>
    %4 = arith.mulf %1, %3 : vector<8x1024xf32>
    %c0_3 = arith.constant 0 : index
    %c0_4 = arith.constant 0 : index
    %5 = vector.load %arg3[%c0_3, %c0_4] : memref<8x1xf32, #tpu.memory_space<vmem>>, vector<8x1xf32>
    %6 = vector.broadcast %5 : vector<8x1xf32> to vector<8x1024xf32>
    %7 = arith.addf %4, %6 : vector<8x1024xf32>
    %cst = arith.constant 0.000000e+00 : f32
    %8 = vector.broadcast %cst : f32 to vector<8x1024xf32>
    %9 = arith.cmpf oge, %7, %8 : vector<8x1024xf32>
    %cst_5 = arith.constant 1.000000e-01 : f32
    %10 = vector.broadcast %cst_5 : f32 to vector<8x1024xf32>
    %11 = arith.mulf %10, %7 : vector<8x1024xf32>
    %12 = arith.select %9, %7, %11 : vector<8x1024xi1>, vector<8x1024xf32>
    %c0_6 = arith.constant 0 : index
    %c0_7 = arith.constant 0 : index
    %13 = vector.load %arg4[%c0_6, %c0_7] : memref<8x1024xf32, #tpu.memory_space<vmem>>, vector<8x1024xf32>
    tpu.vector_store %arg4[%c0_6, %c0_7], %12 {strides = array<i32>} : memref<8x1024xf32, #tpu.memory_space<vmem>>, vector<8x1024xf32>,
    return
  }
  func.func @transform_0(%arg0: i32) -> (i32, i32) {
    %c0_i32 = arith.constant 0 : i32
    %c0_i32_0 = arith.constant 0 : i32
    return %c0_i32, %arg0 : i32, i32
  }
  func.func @transform_1(%arg0: i32) -> (i32, i32) {
    %c0_i32 = arith.constant 0 : i32
    %c0_i32_0 = arith.constant 0 : i32
    %c0_i32_1 = arith.constant 0 : i32
    return %c0_i32, %c0_i32_0 : i32, i32
  }
  func.func @transform_2(%arg0: i32) -> (i32, i32) {
    %c0_i32 = arith.constant 0 : i32
    %c0_i32_0 = arith.constant 0 : i32
    %c0_i32_1 = arith.constant 0 : i32
    return %c0_i32, %c0_i32_0 : i32, i32
  }
  func.func @transform_3(%arg0: i32) -> (i32, i32) {
    %c0_i32 = arith.constant 0 : i32
    %c0_i32_0 = arith.constant 0 : i32
    return %c0_i32, %arg0 : i32, i32
  }
}

</mosaic_0001>

<llo_original>
// kernel: conv_layer_bn_forward.3
$region0: #{conv_layer_bn_forward.3}
  #allocation0 [shape = 'u32[]', space=smem, size = 0x4, offset = 0x4, fixed_abs, tag = 'smem constant byte address 0x4 - core index']
  #allocation1 [shape = 'u32[144,128]{1,0:T(1,128)}', space=vmem, size = 0x12000, scoped, tag = 'internal scratch']
  %s0 = inlined_call_operand.vmem [shape: bf16[8,1024], index: 0, kind: input, shape index: {}]
  %s1 = inlined_call_operand.vmem [shape: f32[8,1], index: 1, kind: input, shape index: {}]
  %s2 = inlined_call_operand.vmem [shape: f32[8,1], index: 2, kind: input, shape index: {}]
  %s3 = inlined_call_operand.vmem [shape: f32[8,1024], index: 3, kind: output, shape index: {}]
  %s4 = sld [smem:[#allocation0]]
  $region22: #{conv_layer_bn_forward.3} parent=0
    _
  %s6 = ssub.s32 1, %s4
  %s7 = scalar_select 0, %s6, %s4
  // Predicated region
  $region2: #{conv_layer_bn_forward.3} parent=0 // pred_check
    _
  $region3: #{conv_layer_bn_forward.3} parent=0 // pred_check_branch
    %9 = sbr.rel (0) target = $region5
  $region4: #{conv_layer_bn_forward.3} parent=0 // pred_region
    _
  $region5: #{conv_layer_bn_forward.3} parent=0 // pred_fallthru
    _
  // Predicated region
  $region6: #{conv_layer_bn_forward.3} parent=0 // pred_check
    _
  $region7: #{conv_layer_bn_forward.3} parent=0 // pred_check_branch
    %11 = sbr.rel (0) target = $region9
  $region8: #{conv_layer_bn_forward.3} parent=0 // pred_region
    _
  $region9: #{conv_layer_bn_forward.3} parent=0 // pred_fallthru
    _
  // Predicated region
  $region10: #{conv_layer_bn_forward.3} parent=0 // pred_check
    _
  $region11: #{conv_layer_bn_forward.3} parent=0 // pred_check_branch
    %13 = sbr.rel (0) target = $region13
  $region12: #{conv_layer_bn_forward.3} parent=0 // pred_region
    _
  $region13: #{conv_layer_bn_forward.3} parent=0 // pred_fallthru
    _
  %v14 = vld [vmem:[%s0] sm:$0xff]
  %v15 = vld [vmem:[%s0 + $0x8] sm:$0xff]
  %v16 = vld [vmem:[%s0 + $0x10] sm:$0xff]
  %v17 = vld [vmem:[%s0 + $0x18] sm:$0xff]
  %v18 = vunpack.c.l.bf16 %v14
  %v19 = vunpack.c.h.bf16 %v14
  %v20 = vunpack.c.l.bf16 %v15
  %v21 = vunpack.c.h.bf16 %v15
  %v22 = vunpack.c.l.bf16 %v16
  %v23 = vunpack.c.h.bf16 %v16
  %v24 = vunpack.c.l.bf16 %v17
  %v25 = vunpack.c.h.bf16 %v17
  %v26 = vld [vmem:[%s1] sm:$0xff]
  %28 = vset.pattern.permute.xlu0 0
  %29 = vperm.xlu0 %28, %v26
  %v30 = vpop.permute.xlu0 %29
  %v32 = vmul.f32 %v18, %v30
  %v33 = vmul.f32 %v19, %v30
  %v34 = vmul.f32 %v20, %v30
  %v35 = vmul.f32 %v21, %v30
  %v36 = vmul.f32 %v22, %v30
  %v37 = vmul.f32 %v23, %v30
  %v38 = vmul.f32 %v24, %v30
  %v39 = vmul.f32 %v25, %v30
  %v40 = vld [vmem:[%s2] sm:$0xff]
  %42 = vset.pattern.permute.xlu0 0
  %43 = vperm.xlu0 %42, %v40
  %v44 = vpop.permute.xlu0 %43
  %v46 = vadd.f32 %v32, %v44
  %v47 = vadd.f32 %v33, %v44
  %v48 = vadd.f32 %v34, %v44
  %v49 = vadd.f32 %v35, %v44
  %v50 = vadd.f32 %v36, %v44
  %v51 = vadd.f32 %v37, %v44
  %v52 = vadd.f32 %v38, %v44
  %v53 = vadd.f32 %v39, %v44
  %vm54 = vcmp.ge.f32.partialorder %v46, 0.0
  %vm55 = vcmp.ge.f32.partialorder %v47, 0.0
  %vm56 = vcmp.ge.f32.partialorder %v48, 0.0
  %vm57 = vcmp.ge.f32.partialorder %v49, 0.0
  %vm58 = vcmp.ge.f32.partialorder %v50, 0.0
  %vm59 = vcmp.ge.f32.partialorder %v51, 0.0
  %vm60 = vcmp.ge.f32.partialorder %v52, 0.0
  %vm61 = vcmp.ge.f32.partialorder %v53, 0.0
  %v62 = vmul.f32 %v46, 0.1
  %v63 = vmul.f32 %v47, 0.1
  %v64 = vmul.f32 %v48, 0.1
  %v65 = vmul.f32 %v49, 0.1
  %v66 = vmul.f32 %v50, 0.1
  %v67 = vmul.f32 %v51, 0.1
  %v68 = vmul.f32 %v52, 0.1
  %v69 = vmul.f32 %v53, 0.1
  %v70 = vsel %vm54, %v46, %v62
  %v71 = vsel %vm55, %v47, %v63
  %v72 = vsel %vm56, %v48, %v64
  %v73 = vsel %vm57, %v49, %v65
  %v74 = vsel %vm58, %v50, %v66
  %v75 = vsel %vm59, %v51, %v67
  %v76 = vsel %vm60, %v52, %v68
  %v77 = vsel %vm61, %v53, %v69
  %78 = vst [vmem:[%s3] sm:$0xff] %v70
  %79 = vst [vmem:[%s3 + $0x8] sm:$0xff] %v71
  %80 = vst [vmem:[%s3 + $0x10] sm:$0xff] %v72
  %81 = vst [vmem:[%s3 + $0x18] sm:$0xff] %v73
  %82 = vst [vmem:[%s3 + $0x20] sm:$0xff] %v74
  %83 = vst [vmem:[%s3 + $0x28] sm:$0xff] %v75
  %84 = vst [vmem:[%s3 + $0x30] sm:$0xff] %v76
  %85 = vst [vmem:[%s3 + $0x38] sm:$0xff] %v77
  // Predicated region
  $region14: #{conv_layer_bn_forward.3} parent=0 // pred_check
    _
  $region15: #{conv_layer_bn_forward.3} parent=0 // pred_check_branch
    %87 = sbr.rel (0) target = $region17
  $region16: #{conv_layer_bn_forward.3} parent=0 // pred_region
    _
  $region17: #{conv_layer_bn_forward.3} parent=0 // pred_fallthru
    _
  // Predicated region
  $region18: #{conv_layer_bn_forward.3} parent=0 // pred_check
    _
  $region19: #{conv_layer_bn_forward.3} parent=0 // pred_check_branch
    %89 = sbr.rel (0) target = $region21
  $region20: #{conv_layer_bn_forward.3} parent=0 // pred_region
    _
  $region21: #{conv_layer_bn_forward.3} parent=0 // pred_fallthru
    _

// kernel: conv_layer_bn_forward.2
$region0: #{conv_layer_bn_forward.2}
  #allocation0 [shape = 'u32[]', space=smem, size = 0x4, offset = 0x4, fixed_abs, tag = 'smem constant byte address 0x4 - core index']
  #allocation1 [shape = 'u32[144,128]{1,0:T(1,128)}', space=vmem, size = 0x12000, scoped, tag = 'internal scratch']
  %s0 = inlined_call_operand.vmem [shape: bf16[8,112], index: 0, kind: input, shape index: {}]
  %s1 = inlined_call_operand.vmem [shape: bf16[112,1024], index: 1, kind: input, shape index: {}]
  %s2 = inlined_call_operand.vmem [shape: bf16[8,1024], index: 2, kind: output, shape index: {0}]
  %s3 = inlined_call_operand.vmem [shape: f32[8,1], index: 3, kind: output, shape index: {1}]
  %s4 = inlined_call_operand.vmem [shape: f32[8,1], index: 4, kind: output, shape index: {2}]
  %5 = xla_tuple %s2, %s3, %s4
  %s6 = sld [smem:[#allocation0]]
  $region38: #{conv_layer_bn_forward.2} parent=0
    _
  %s8 = ssub.s32 1, %s6
  %s9 = scalar_select 0, %s8, %s6
  // Predicated region
  $region2: #{conv_layer_bn_forward.2} parent=0 // pred_check
    _
  $region3: #{conv_layer_bn_forward.2} parent=0 // pred_check_branch
    %11 = sbr.rel (0) target = $region5
  $region4: #{conv_layer_bn_forward.2} parent=0 // pred_region
    _
  $region5: #{conv_layer_bn_forward.2} parent=0 // pred_fallthru
    _
  // Predicated region
  $region6: #{conv_layer_bn_forward.2} parent=0 // pred_check
    _
  $region7: #{conv_layer_bn_forward.2} parent=0 // pred_check_branch
    %13 = sbr.rel (0) target = $region9
  $region8: #{conv_layer_bn_forward.2} parent=0 // pred_region
    _
  $region9: #{conv_layer_bn_forward.2} parent=0 // pred_fallthru
    _
  %p15 = scmp.eq.s32.totalorder 0, 0
  // Predicated region
  $region10: #{conv_layer_bn_forward.2} parent=0 // pred_check
    %p16 = pneg %p15
  $region11: #{conv_layer_bn_forward.2} parent=0 // pred_check_branch
    %18 = sbr.rel (%p16) target = $region13
  $region12: #{conv_layer_bn_forward.2} parent=0 // pred_region
    %vm19 = vcmask 7168
    %20 = vst.msk [vmem:[%s3] sm:$0xff] %vm19, 0.0
    %21 = vst.msk [vmem:[%s4] sm:$0xff] %vm19, 0.0
  $region13: #{conv_layer_bn_forward.2} parent=0 // pred_fallthru
    _
  %v22 = vld [vmem:[%s0] sm:$0xf]
  %v23 = vld [vmem:[%s1] sm:$0xff]
  %v24 = vld [vmem:[%s1 + $0x8] sm:$0xff]
  %v25 = vld [vmem:[%s1 + $0x10] sm:$0xff]
  %v26 = vld [vmem:[%s1 + $0x18] sm:$0xff]
  %v27 = vld [vmem:[%s1 + $0x20] sm:$0xff]
  %v28 = vld [vmem:[%s1 + $0x28] sm:$0xff]
  %v29 = vld [vmem:[%s1 + $0x30] sm:$0xff]
  %v30 = vld [vmem:[%s1 + $0x38] sm:$0xff]
  %v31 = vld [vmem:[%s1 + $0x40] sm:$0xff]
  %v32 = vld [vmem:[%s1 + $0x48] sm:$0xff]
  %v33 = vld [vmem:[%s1 + $0x50] sm:$0xff]
  %v34 = vld [vmem:[%s1 + $0x58] sm:$0xff]
  %v35 = vld [vmem:[%s1 + $0x60] sm:$0xff]
  %v36 = vld [vmem:[%s1 + $0x68] sm:$0xff]
  %v37 = vld [vmem:[%s1 + $0x70] sm:$0xff]
  %v38 = vld [vmem:[%s1 + $0x78] sm:$0xff]
  %v39 = vld [vmem:[%s1 + $0x80] sm:$0xff]
  %v40 = vld [vmem:[%s1 + $0x88] sm:$0xff]
  %v41 = vld [vmem:[%s1 + $0x90] sm:$0xff]
  %v42 = vld [vmem:[%s1 + $0x98] sm:$0xff]
  %v43 = vld [vmem:[%s1 + $0xa0] sm:$0xff]
  %v44 = vld [vmem:[%s1 + $0xa8] sm:$0xff]
  %v45 = vld [vmem:[%s1 + $0xb0] sm:$0xff]
  %v46 = vld [vmem:[%s1 + $0xb8] sm:$0xff]
  %v47 = vld [vmem:[%s1 + $0xc0] sm:$0xff]
  %v48 = vld [vmem:[%s1 + $0xc8] sm:$0xff]
  %v49 = vld [vmem:[%s1 + $0xd0] sm:$0xff]
  %v50 = vld [vmem:[%s1 + $0xd8] sm:$0xff]
  %v51 = vld [vmem:[%s1 + $0xe0] sm:$0xff]
  %v52 = vld [vmem:[%s1 + $0xe8] sm:$0xff]
  %v53 = vld [vmem:[%s1 + $0xf0] sm:$0xff]
  %v54 = vld [vmem:[%s1 + $0xf8] sm:$0xff]
  %v55 = vld [vmem:[%s1 + $0x100] sm:$0xff]
  %v56 = vld [vmem:[%s1 + $0x108] sm:$0xff]
  %v57 = vld [vmem:[%s1 + $0x110] sm:$0xff]
  %v58 = vld [vmem:[%s1 + $0x118] sm:$0xff]
  %v59 = vld [vmem:[%s1 + $0x120] sm:$0xff]
  %v60 = vld [vmem:[%s1 + $0x128] sm:$0xff]
  %v61 = vld [vmem:[%s1 + $0x130] sm:$0xff]
  %v62 = vld [vmem:[%s1 + $0x138] sm:$0xff]
  %v63 = vld [vmem:[%s1 + $0x140] sm:$0xff]
  %v64 = vld [vmem:[%s1 + $0x148] sm:$0xff]
  %v65 = vld [vmem:[%s1 + $0x150] sm:$0xff]
  %v66 = vld [vmem:[%s1 + $0x158] sm:$0xff]
  %v67 = vld [vmem:[%s1 + $0x160] sm:$0xff]
  %v68 = vld [vmem:[%s1 + $0x168] sm:$0xff]
  %v69 = vld [vmem:[%s1 + $0x170] sm:$0xff]
  %v70 = vld [vmem:[%s1 + $0x178] sm:$0xff]
  %v71 = vld [vmem:[%s1 + $0x180] sm:$0xff]
  %v72 = vld [vmem:[%s1 + $0x188] sm:$0xff]
  %v73 = vld [vmem:[%s1 + $0x190] sm:$0xff]
  %v74 = vld [vmem:[%s1 + $0x198] sm:$0xff]
  %v75 = vld [vmem:[%s1 + $0x1a0] sm:$0xff]
  %v76 = vld [vmem:[%s1 + $0x1a8] sm:$0xff]
  %v77 = vld [vmem:[%s1 + $0x1b0] sm:$0xff]
  %v78 = vld [vmem:[%s1 + $0x1b8] sm:$0xff]
  %v135 = vunpack.c.l.b16 %v23
  %v136 = vunpack.c.h.b16 %v23
  %v137 = vunpack.c.l.b16 %v24
  %v138 = vunpack.c.h.b16 %v24
  %v139 = vunpack.c.l.b16 %v25
  %v140 = vunpack.c.h.b16 %v25
  %v141 = vunpack.c.l.b16 %v26
  %v142 = vunpack.c.h.b16 %v26
  %v143 = vunpack.c.l.b16 %v27
  %v144 = vunpack.c.h.b16 %v27
  %v145 = vunpack.c.l.b16 %v28
  %v146 = vunpack.c.h.b16 %v28
  %v147 = vunpack.c.l.b16 %v29
  %v148 = vunpack.c.h.b16 %v29
  %v149 = vunpack.c.l.b16 %v30
  %v150 = vunpack.c.h.b16 %v30
  %v151 = vunpack.c.l.b16 %v31
  %v152 = vunpack.c.h.b16 %v31
  %v153 = vunpack.c.l.b16 %v32
  %v154 = vunpack.c.h.b16 %v32
  %v155 = vunpack.c.l.b16 %v33
  %v156 = vunpack.c.h.b16 %v33
  %v157 = vunpack.c.l.b16 %v34
  %v158 = vunpack.c.h.b16 %v34
  %v159 = vunpack.c.l.b16 %v35
  %v160 = vunpack.c.h.b16 %v35
  %v161 = vunpack.c.l.b16 %v36
  %v162 = vunpack.c.h.b16 %v36
  %v163 = vunpack.c.l.b16 %v37
  %v164 = vunpack.c.h.b16 %v37
  %v165 = vunpack.c.l.b16 %v38
  %v166 = vunpack.c.h.b16 %v38
  %v167 = vunpack.c.l.b16 %v39
  %v168 = vunpack.c.h.b16 %v39
  %v169 = vunpack.c.l.b16 %v40
  %v170 = vunpack.c.h.b16 %v40
  %v171 = vunpack.c.l.b16 %v41
  %v172 = vunpack.c.h.b16 %v41
  %v173 = vunpack.c.l.b16 %v42
  %v174 = vunpack.c.h.b16 %v42
  %v175 = vunpack.c.l.b16 %v43
  %v176 = vunpack.c.h.b16 %v43
  %v177 = vunpack.c.l.b16 %v44
  %v178 = vunpack.c.h.b16 %v44
  %v179 = vunpack.c.l.b16 %v45
  %v180 = vunpack.c.h.b16 %v45
  %v181 = vunpack.c.l.b16 %v46
  %v182 = vunpack.c.h.b16 %v46
  %v183 = vunpack.c.l.b16 %v47
  %v184 = vunpack.c.h.b16 %v47
  %v185 = vunpack.c.l.b16 %v48
  %v186 = vunpack.c.h.b16 %v48
  %v187 = vunpack.c.l.b16 %v49
  %v188 = vunpack.c.h.b16 %v49
  %v189 = vunpack.c.l.b16 %v50
  %v190 = vunpack.c.h.b16 %v50
  %v191 = vunpack.c.l.b16 %v51
  %v192 = vunpack.c.h.b16 %v51
  %v193 = vunpack.c.l.b16 %v52
  %v194 = vunpack.c.h.b16 %v52
  %v195 = vunpack.c.l.b16 %v53
  %v196 = vunpack.c.h.b16 %v53
  %v197 = vunpack.c.l.b16 %v54
  %v198 = vunpack.c.h.b16 %v54
  %v199 = vunpack.c.l.b16 %v55
  %v200 = vunpack.c.h.b16 %v55
  %v201 = vunpack.c.l.b16 %v56
  %v202 = vunpack.c.h.b16 %v56
  %v203 = vunpack.c.l.b16 %v57
  %v204 = vunpack.c.h.b16 %v57
  %v205 = vunpack.c.l.b16 %v58
  %v206 = vunpack.c.h.b16 %v58
  %v207 = vunpack.c.l.b16 %v59
  %v208 = vunpack.c.h.b16 %v59
  %v209 = vunpack.c.l.b16 %v60
  %v210 = vunpack.c.h.b16 %v60
  %v211 = vunpack.c.l.b16 %v61
  %v212 = vunpack.c.h.b16 %v61
  %v213 = vunpack.c.l.b16 %v62
  %v214 = vunpack.c.h.b16 %v62
  %v215 = vunpack.c.l.b16 %v63
  %v216 = vunpack.c.h.b16 %v63
  %v217 = vunpack.c.l.b16 %v64
  %v218 = vunpack.c.h.b16 %v64
  %v219 = vunpack.c.l.b16 %v65
  %v220 = vunpack.c.h.b16 %v65
  %v221 = vunpack.c.l.b16 %v66
  %v222 = vunpack.c.h.b16 %v66
  %v223 = vunpack.c.l.b16 %v67
  %v224 = vunpack.c.h.b16 %v67
  %v225 = vunpack.c.l.b16 %v68
  %v226 = vunpack.c.h.b16 %v68
  %v227 = vunpack.c.l.b16 %v69
  %v228 = vunpack.c.h.b16 %v69
  %v229 = vunpack.c.l.b16 %v70
  %v230 = vunpack.c.h.b16 %v70
  %v231 = vunpack.c.l.b16 %v71
  %v232 = vunpack.c.h.b16 %v71
  %v233 = vunpack.c.l.b16 %v72
  %v234 = vunpack.c.h.b16 %v72
  %v235 = vunpack.c.l.b16 %v73
  %v236 = vunpack.c.h.b16 %v73
  %v237 = vunpack.c.l.b16 %v74
  %v238 = vunpack.c.h.b16 %v74
  %v239 = vunpack.c.l.b16 %v75
  %v240 = vunpack.c.h.b16 %v75
  %v241 = vunpack.c.l.b16 %v76
  %v242 = vunpack.c.h.b16 %v76
  %v243 = vunpack.c.l.b16 %v77
  %v244 = vunpack.c.h.b16 %v77
  %v245 = vunpack.c.l.b16 %v78
  %v246 = vunpack.c.h.b16 %v78
  %v247 = vpack.c.b16 %v143, %v135
  %v248 = vpack.c.b16 %v144, %v136
  %v249 = vpack.c.b16 %v145, %v137
  %v250 = vpack.c.b16 %v146, %v138
  %v251 = vpack.c.b16 %v147, %v139
  %v252 = vpack.c.b16 %v148, %v140
  %v253 = vpack.c.b16 %v149, %v141
  %v254 = vpack.c.b16 %v150, %v142
  %v255 = vpack.c.b16 %v159, %v151
  %v256 = vpack.c.b16 %v160, %v152
  %v257 = vpack.c.b16 %v161, %v153
  %v258 = vpack.c.b16 %v162, %v154
  %v259 = vpack.c.b16 %v163, %v155
  %v260 = vpack.c.b16 %v164, %v156
  %v261 = vpack.c.b16 %v165, %v157
  %v262 = vpack.c.b16 %v166, %v158
  %v263 = vpack.c.b16 %v175, %v167
  %v264 = vpack.c.b16 %v176, %v168
  %v265 = vpack.c.b16 %v177, %v169
  %v266 = vpack.c.b16 %v178, %v170
  %v267 = vpack.c.b16 %v179, %v171
  %v268 = vpack.c.b16 %v180, %v172
  %v269 = vpack.c.b16 %v181, %v173
  %v270 = vpack.c.b16 %v182, %v174
  %v271 = vpack.c.b16 %v191, %v183
  %v272 = vpack.c.b16 %v192, %v184
  %v273 = vpack.c.b16 %v193, %v185
  %v274 = vpack.c.b16 %v194, %v186
  %v275 = vpack.c.b16 %v195, %v187
  %v276 = vpack.c.b16 %v196, %v188
  %v277 = vpack.c.b16 %v197, %v189
  %v278 = vpack.c.b16 %v198, %v190
  %v279 = vpack.c.b16 %v207, %v199
  %v280 = vpack.c.b16 %v208, %v200
  %v281 = vpack.c.b16 %v209, %v201
  %v282 = vpack.c.b16 %v210, %v202
  %v283 = vpack.c.b16 %v211, %v203
  %v284 = vpack.c.b16 %v212, %v204
  %v285 = vpack.c.b16 %v213, %v205
  %v286 = vpack.c.b16 %v214, %v206
  %v287 = vpack.c.b16 %v223, %v215
  %v288 = vpack.c.b16 %v224, %v216
  %v289 = vpack.c.b16 %v225, %v217
  %v290 = vpack.c.b16 %v226, %v218
  %v291 = vpack.c.b16 %v227, %v219
  %v292 = vpack.c.b16 %v228, %v220
  %v293 = vpack.c.b16 %v229, %v221
  %v294 = vpack.c.b16 %v230, %v222
  %v295 = vpack.c.b16 %v239, %v231
  %v296 = vpack.c.b16 %v240, %v232
  %v297 = vpack.c.b16 %v241, %v233
  %v298 = vpack.c.b16 %v242, %v234
  %v299 = vpack.c.b16 %v243, %v235
  %v300 = vpack.c.b16 %v244, %v236
  %v301 = vpack.c.b16 %v245, %v237
  %v302 = vpack.c.b16 %v246, %v238
  %vm359 = vcmask 916480
  %v361 = vsel %vm359, %v22, 0
  %363 = vmatprep.subr.bf16.mxu0 0
  %364 = vmatpush1.bf16.msra.mxu0 0
  %365 = vmatprep.subr.bf16.mxu0 %v296
  %366 = vmatpush1.bf16.msra.mxu0 %v295
  %367 = vmatprep.subr.bf16.mxu0 %v288
  %368 = vmatpush1.bf16.msra.mxu0 %v287
  %369 = vmatprep.subr.bf16.mxu0 %v280
  %370 = vmatpush1.bf16.msra.mxu0 %v279
  %371 = vmatprep.subr.bf16.mxu0 %v272
  %372 = vmatpush1.bf16.msra.mxu0 %v271
  %373 = vmatprep.subr.bf16.mxu0 %v264
  %374 = vmatpush1.bf16.msra.mxu0 %v263
  %375 = vmatprep.subr.bf16.mxu0 %v256
  %376 = vmatpush1.bf16.msra.mxu0 %v255
  %377 = vmatprep.subr.bf16.mxu0 %v248
  %378 = vmatpush1.bf16.msra.mxu0 %v247
  %379 = vmatprep.subr.bf16.mxu0 0
  %380 = vmatpush2.bf16.msra.mxu0 0
  %381 = vmatprep.subr.bf16.mxu0 0
  %382 = vmatpush2.bf16.msra.mxu0 0
  %383 = vmatprep.subr.bf16.mxu0 0
  %384 = vmatpush2.bf16.msra.mxu0 0
  %385 = vmatprep.subr.bf16.mxu0 0
  %386 = vmatpush2.bf16.msra.mxu0 0
  %387 = vmatprep.subr.bf16.mxu0 0
  %388 = vmatpush2.bf16.msra.mxu0 0
  %389 = vmatprep.subr.bf16.mxu0 0
  %390 = vmatpush2.bf16.msra.mxu0 0
  %391 = vmatprep.subr.bf16.mxu0 0
  %392 = vmatpush2.bf16.msra.mxu0 0
  %393 = vmatprep.subr.bf16.mxu0 0
  %394 = vmatpush2.bf16.msra.mxu0 0
  %395 = vmatprep.mubr.bf16.mxu0 0
  %396 = vmatmul.mubr.bf16.gmra.mxu0 %v361
  %v397 = vpop.f32.mrf.mxu0
  %v398 = vadd.f32 0.0, %v397
  %v399 = vpop.f32.mrf.mxu0
  %v400 = vadd.f32 0.0, %v399
  %v401 = vpop.f32.mrf.mxu0
  %v402 = vpop.f32.mrf.mxu0
  %403 = vdwg.mxu0
  %404 = vmatprep.subr.bf16.mxu0 0
  %405 = vmatpush1.bf16.msra.mxu0 0
  %406 = vmatprep.subr.bf16.mxu0 %v298
  %407 = vmatpush1.bf16.msra.mxu0 %v297
  %408 = vmatprep.subr.bf16.mxu0 %v290
  %409 = vmatpush1.bf16.msra.mxu0 %v289
  %410 = vmatprep.subr.bf16.mxu0 %v282
  %411 = vmatpush1.bf16.msra.mxu0 %v281
  %412 = vmatprep.subr.bf16.mxu0 %v274
  %413 = vmatpush1.bf16.msra.mxu0 %v273
  %414 = vmatprep.subr.bf16.mxu0 %v266
  %415 = vmatpush1.bf16.msra.mxu0 %v265
  %416 = vmatprep.subr.bf16.mxu0 %v258
  %417 = vmatpush1.bf16.msra.mxu0 %v257
  %418 = vmatprep.subr.bf16.mxu0 %v250
  %419 = vmatpush1.bf16.msra.mxu0 %v249
  %420 = vmatprep.subr.bf16.mxu0 0
  %421 = vmatpush2.bf16.msra.mxu0 0
  %422 = vmatprep.subr.bf16.mxu0 0
  %423 = vmatpush2.bf16.msra.mxu0 0
  %424 = vmatprep.subr.bf16.mxu0 0
  %425 = vmatpush2.bf16.msra.mxu0 0
  %426 = vmatprep.subr.bf16.mxu0 0
  %427 = vmatpush2.bf16.msra.mxu0 0
  %428 = vmatprep.subr.bf16.mxu0 0
  %429 = vmatpush2.bf16.msra.mxu0 0
  %430 = vmatprep.subr.bf16.mxu0 0
  %431 = vmatpush2.bf16.msra.mxu0 0
  %432 = vmatprep.subr.bf16.mxu0 0
  %433 = vmatpush2.bf16.msra.mxu0 0
  %434 = vmatprep.subr.bf16.mxu0 0
  %435 = vmatpush2.bf16.msra.mxu0 0
  %436 = vmatprep.mubr.bf16.mxu0 0
  %437 = vmatmul.mubr.bf16.gmra.mxu0 %v361
  %v438 = vpop.f32.mrf.mxu0
  %v439 = vadd.f32 0.0, %v438
  %v440 = vpop.f32.mrf.mxu0
  %v441 = vadd.f32 0.0, %v440
  %v442 = vpop.f32.mrf.mxu0
  %v443 = vpop.f32.mrf.mxu0
  %444 = vdwg.mxu0
  %445 = vmatprep.subr.bf16.mxu0 0
  %446 = vmatpush1.bf16.msra.mxu0 0
  %447 = vmatprep.subr.bf16.mxu0 %v300
  %448 = vmatpush1.bf16.msra.mxu0 %v299
  %449 = vmatprep.subr.bf16.mxu0 %v292
  %450 = vmatpush1.bf16.msra.mxu0 %v291
  %451 = vmatprep.subr.bf16.mxu0 %v284
  %452 = vmatpush1.bf16.msra.mxu0 %v283
  %453 = vmatprep.subr.bf16.mxu0 %v276
  %454 = vmatpush1.bf16.msra.mxu0 %v275
  %455 = vmatprep.subr.bf16.mxu0 %v268
  %456 = vmatpush1.bf16.msra.mxu0 %v267
  %457 = vmatprep.subr.bf16.mxu0 %v260
  %458 = vmatpush1.bf16.msra.mxu0 %v259
  %459 = vmatprep.subr.bf16.mxu0 %v252
  %460 = vmatpush1.bf16.msra.mxu0 %v251
  %461 = vmatprep.subr.bf16.mxu0 0
  %462 = vmatpush2.bf16.msra.mxu0 0
  %463 = vmatprep.subr.bf16.mxu0 0
  %464 = vmatpush2.bf16.msra.mxu0 0
  %465 = vmatprep.subr.bf16.mxu0 0
  %466 = vmatpush2.bf16.msra.mxu0 0
  %467 = vmatprep.subr.bf16.mxu0 0
  %468 = vmatpush2.bf16.msra.mxu0 0
  %469 = vmatprep.subr.bf16.mxu0 0
  %470 = vmatpush2.bf16.msra.mxu0 0
  %471 = vmatprep.subr.bf16.mxu0 0
  %472 = vmatpush2.bf16.msra.mxu0 0
  %473 = vmatprep.subr.bf16.mxu0 0
  %474 = vmatpush2.bf16.msra.mxu0 0
  %475 = vmatprep.subr.bf16.mxu0 0
  %476 = vmatpush2.bf16.msra.mxu0 0
  %477 = vmatprep.mubr.bf16.mxu0 0
  %478 = vmatmul.mubr.bf16.gmra.mxu0 %v361
  %v479 = vpop.f32.mrf.mxu0
  %v480 = vadd.f32 0.0, %v479
  %v481 = vpop.f32.mrf.mxu0
  %v482 = vadd.f32 0.0, %v481
  %v483 = vpop.f32.mrf.mxu0
  %v484 = vpop.f32.mrf.mxu0
  %485 = vdwg.mxu0
  %486 = vmatprep.subr.bf16.mxu0 0
  %487 = vmatpush1.bf16.msra.mxu0 0
  %488 = vmatprep.subr.bf16.mxu0 %v302
  %489 = vmatpush1.bf16.msra.mxu0 %v301
  %490 = vmatprep.subr.bf16.mxu0 %v294
  %491 = vmatpush1.bf16.msra.mxu0 %v293
  %492 = vmatprep.subr.bf16.mxu0 %v286
  %493 = vmatpush1.bf16.msra.mxu0 %v285
  %494 = vmatprep.subr.bf16.mxu0 %v278
  %495 = vmatpush1.bf16.msra.mxu0 %v277
  %496 = vmatprep.subr.bf16.mxu0 %v270
  %497 = vmatpush1.bf16.msra.mxu0 %v269
  %498 = vmatprep.subr.bf16.mxu0 %v262
  %499 = vmatpush1.bf16.msra.mxu0 %v261
  %500 = vmatprep.subr.bf16.mxu0 %v254
  %501 = vmatpush1.bf16.msra.mxu0 %v253
  %502 = vmatprep.subr.bf16.mxu0 0
  %503 = vmatpush2.bf16.msra.mxu0 0
  %504 = vmatprep.subr.bf16.mxu0 0
  %505 = vmatpush2.bf16.msra.mxu0 0
  %506 = vmatprep.subr.bf16.mxu0 0
  %507 = vmatpush2.bf16.msra.mxu0 0
  %508 = vmatprep.subr.bf16.mxu0 0
  %509 = vmatpush2.bf16.msra.mxu0 0
  %510 = vmatprep.subr.bf16.mxu0 0
  %511 = vmatpush2.bf16.msra.mxu0 0
  %512 = vmatprep.subr.bf16.mxu0 0
  %513 = vmatpush2.bf16.msra.mxu0 0
  %514 = vmatprep.subr.bf16.mxu0 0
  %515 = vmatpush2.bf16.msra.mxu0 0
  %516 = vmatprep.subr.bf16.mxu0 0
  %517 = vmatpush2.bf16.msra.mxu0 0
  %518 = vmatprep.mubr.bf16.mxu0 0
  %519 = vmatmul.mubr.bf16.gmra.mxu0 %v361
  %v520 = vpop.f32.mrf.mxu0
  %v521 = vadd.f32 0.0, %v520
  %v522 = vpop.f32.mrf.mxu0
  %v523 = vadd.f32 0.0, %v522
  %v524 = vpop.f32.mrf.mxu0
  %v525 = vpop.f32.mrf.mxu0
  %526 = vdwg.mxu0
  %v527 = vpack.c.bf16 %v398, %v398
  %v528 = vpack.c.bf16 %v400, %v400
  %v529 = vpack.c.bf16 %v439, %v439
  %v530 = vpack.c.bf16 %v441, %v441
  %v531 = vpack.c.bf16 %v480, %v480
  %v532 = vpack.c.bf16 %v482, %v482
  %v533 = vpack.c.bf16 %v521, %v521
  %v534 = vpack.c.bf16 %v523, %v523
  %v543 = vunpack.c.l.b16 %v527
  %v544 = vunpack.c.l.b16 %v528
  %v545 = vunpack.c.l.b16 %v529
  %v546 = vunpack.c.l.b16 %v530
  %v547 = vunpack.c.l.b16 %v531
  %v548 = vunpack.c.l.b16 %v532
  %v549 = vunpack.c.l.b16 %v533
  %v550 = vunpack.c.l.b16 %v534
  %v551 = vpack.c.b16 %v544, %v543
  %v552 = vpack.c.b16 %v546, %v545
  %v553 = vpack.c.b16 %v548, %v547
  %v554 = vpack.c.b16 %v550, %v549
  %559 = vst [vmem:[%s2] sm:$0xff] %v551
  %560 = vst [vmem:[%s2 + $0x8] sm:$0xff] %v552
  %561 = vst [vmem:[%s2 + $0x10] sm:$0xff] %v553
  %562 = vst [vmem:[%s2 + $0x18] sm:$0xff] %v554
  %v563 = vld [vmem:[%s3] sm:$0xff]
  %v564 = vadd.f32 %v398, %v400
  %v565 = vadd.f32 %v564, %v439
  %v566 = vadd.f32 %v565, %v441
  %v567 = vadd.f32 %v566, %v480
  %v568 = vadd.f32 %v567, %v482
  %v569 = vadd.f32 %v568, %v521
  %v570 = vadd.f32 %v569, %v523
  %571 = vadd.xlane.f32.xlu0 %v570
  %v572 = vpop.xlane.xlu0 %571
  %v573 = vadd.f32 %v563, %v572
  %vm574 = vcmask 7168
  %575 = vst.msk [vmem:[%s3] sm:$0xff] %vm574, %v573
  %v576 = vld [vmem:[%s4] sm:$0xff]
  %v577 = vmul.f32 %v398, %v398
  %v578 = vmul.f32 %v400, %v400
  %v579 = vmul.f32 %v439, %v439
  %v580 = vmul.f32 %v441, %v441
  %v581 = vmul.f32 %v480, %v480
  %v582 = vmul.f32 %v482, %v482
  %v583 = vmul.f32 %v521, %v521
  %v584 = vmul.f32 %v523, %v523
  %v585 = vadd.f32 %v577, %v578
  %v586 = vadd.f32 %v585, %v579
  %v587 = vadd.f32 %v586, %v580
  %v588 = vadd.f32 %v587, %v581
  %v589 = vadd.f32 %v588, %v582
  %v590 = vadd.f32 %v589, %v583
  %v591 = vadd.f32 %v590, %v584
  %592 = vadd.xlane.f32.xlu0 %v591
  %v593 = vpop.xlane.xlu0 %592
  %v594 = vadd.f32 %v576, %v593
  %595 = vst.msk [vmem:[%s4] sm:$0xff] %vm574, %v594
  // Predicated region
  $region14: #{conv_layer_bn_forward.2} parent=0 // pred_check
    _
  $region15: #{conv_layer_bn_forward.2} parent=0 // pred_check_branch
    %597 = sbr.rel (0) target = $region17
  $region16: #{conv_layer_bn_forward.2} parent=0 // pred_region
    _
  $region17: #{conv_layer_bn_forward.2} parent=0 // pred_fallthru
    _
  // Predicated region
  $region18: #{conv_layer_bn_forward.2} parent=0 // pred_check
    _
  $region19: #{conv_layer_bn_forward.2} parent=0 // pred_check_branch
    %599 = sbr.rel (0) target = $region21
  $region20: #{conv_layer_bn_forward.2} parent=0 // pred_region
    _
  $region21: #{conv_layer_bn_forward.2} parent=0 // pred_fallthru
    _
  // Predicated region
  $region22: #{conv_layer_bn_forward.2} parent=0 // pred_check
    _
  $region23: #{conv_layer_bn_forward.2} parent=0 // pred_check_branch
    %601 = sbr.rel (0) target = $region25
  $region24: #{conv_layer_bn_forward.2} parent=0 // pred_region
    _
  $region25: #{conv_layer_bn_forward.2} parent=0 // pred_fallthru
    _
  // Predicated region
  $region26: #{conv_layer_bn_forward.2} parent=0 // pred_check
    _
  $region27: #{conv_layer_bn_forward.2} parent=0 // pred_check_branch
    %603 = sbr.rel (0) target = $region29
  $region28: #{conv_layer_bn_forward.2} parent=0 // pred_region
    _
  $region29: #{conv_layer_bn_forward.2} parent=0 // pred_fallthru
    _
  // Predicated region
  $region30: #{conv_layer_bn_forward.2} parent=0 // pred_check
    _
  $region31: #{conv_layer_bn_forward.2} parent=0 // pred_check_branch
    %605 = sbr.rel (0) target = $region33
  $region32: #{conv_layer_bn_forward.2} parent=0 // pred_region
    _
  $region33: #{conv_layer_bn_forward.2} parent=0 // pred_fallthru
    _
  // Predicated region
  $region34: #{conv_layer_bn_forward.2} parent=0 // pred_check
    _
  $region35: #{conv_layer_bn_forward.2} parent=0 // pred_check_branch
    %607 = sbr.rel (0) target = $region37
  $region36: #{conv_layer_bn_forward.2} parent=0 // pred_region
    _
  $region37: #{conv_layer_bn_forward.2} parent=0 // pred_fallthru
    _

</llo_original>
